<compile_context>
chip_gen: v6e
topology: v6e:2x2x1
jax: 0.10.0
libtpu: 0.0.40
codegen_flags: <defaults>
</compile_context>

<pallas_src>
import math

import jax
import jax.numpy as jnp
from jax.experimental import pallas as pl
from jax.experimental.pallas import tpu as pltpu


_SQRT_2_OVER_PI = math.sqrt(2.0 / math.pi)
_LANE = 128
_SUBLANE = 8


def _cdiv(a, b):
    return (a + b - 1) // b


def _round_up(a, b):
    return _cdiv(a, b) * b


def _gelu_tanh(x):
    # tanh-approx GELU (== PyTorch nn.GELU(approximate='tanh')); runs on the EUP
    # slot which is idle in this kernel.
    # TODO(synk): PyTorch nn.GELU() default is the exact erf form; the tanh
    # approximation differs by O(1e-3) but has a guaranteed Mosaic lowering.
    return 0.5 * x * (1.0 + jnp.tanh(_SQRT_2_OVER_PI * (x + 0.044715 * x * x * x)))


def _mlp_kernel(x_ref, w1_ref, b1_ref, w2_ref, b2_ref, o_ref, acc_ref):
    """One (row-tile i, hidden-tile h) step of y = gelu(x@w1 + b1) @ w2 + b2."""
    h_idx = pl.program_id(1)

    @pl.when(h_idx == 0)
    def _():
        acc_ref[...] = jnp.zeros_like(acc_ref)

    x = x_ref[...]
    if x.dtype != w1_ref.dtype:
        x = x.astype(w1_ref.dtype)            # bf16 MXU operands, in-kernel cast
    h = jnp.dot(x, w1_ref[...], preferred_element_type=jnp.float32)
    h = _gelu_tanh(h + b1_ref[...])           # f32 elementwise (v5e-safe)
    acc_ref[...] += jnp.dot(h.astype(w2_ref.dtype), w2_ref[...],
                            preferred_element_type=jnp.float32)

    @pl.when(h_idx == pl.num_programs(1) - 1)
    def _():
        o_ref[...] = (acc_ref[...] + b2_ref[...]).astype(o_ref.dtype)


def _pad2(a, rows, cols):
    r, c = a.shape
    if r == rows and c == cols:
        return a
    return jnp.pad(a, ((0, rows - r), (0, cols - c)))


def mlp_forward(x, w1, b1, w2, b2, *, tm_max=1024, vmem_fraction=0.55):
    """Fused MLP: gelu(x @ w1 + b1) @ w2 + b2, applied over the last dim of x."""
    orig_dtype = x.dtype
    lead = x.shape[:-1]
    d_in = x.shape[-1]
    hid = w1.shape[1]
    d_out = w2.shape[1]
    assert w1.shape[0] == d_in and w2.shape[0] == hid

    m = math.prod(lead) if lead else 1
    x_flat = x.reshape(m, d_in)

    # Lane-align contraction / output dims (zero padding is numerically exact:
    # padded hidden cols produce GELU(0)=0 and meet zero rows of w2).
    d_in_p = _round_up(d_in, _LANE)
    hid_p = _round_up(hid, _LANE)
    d_out_p = _round_up(d_out, _LANE)

    x_p = x_flat if d_in_p == d_in else jnp.pad(x_flat, ((0, 0), (0, d_in_p - d_in)))
    w1_p = _pad2(w1, d_in_p, hid_p)
    w2_p = _pad2(w2, hid_p, d_out_p)
    b1_p = _pad2(b1.reshape(1, hid).astype(jnp.float32), 1, hid_p)
    b2_p = _pad2(b2.reshape(1, d_out).astype(jnp.float32), 1, d_out_p)

    # Hidden tile: an exact divisor of hid_p (no ragged weight blocks feeding the
    # accumulator); bounds VMEM independently of hidden_features.
    if hid_p <= 512:
        th = hid_p
    elif hid_p % 512 == 0:
        th = 512
    elif hid_p % 256 == 0:
        th = 256
    else:
        th = _LANE
    grid_h = hid_p // th

    # Generation-aware VMEM budget -> row tile (conservative cap keeps v7x safe
    # even if the capacity query reports per-chip rather than per-TC numbers).
    try:
        vmem_cap = int(pltpu.get_tpu_info().vmem_capacity_bytes)
    except Exception:  # pragma: no cover - conservative fallback
        vmem_cap = 64 * 1024 * 1024
    budget = min(int(vmem_cap * vmem_fraction), 40 * 1024 * 1024)

    x_b = jnp.dtype(x_p.dtype).itemsize
    w_b = jnp.dtype(w1_p.dtype).itemsize
    o_b = jnp.dtype(orig_dtype).itemsize
    fixed = 2 * th * (d_in_p + d_out_p) * w_b + 2 * (th + d_out_p) * 4  # weights + biases (2-buffered)
    per_row = (2 * d_in_p * x_b          # x tile (double-buffered)
               + 2 * d_out_p * o_b       # out tile (double-buffered)
               + d_out_p * 4             # f32 accumulator scratch
               + th * 6                  # f32 h + bf16 copy of h
               + d_in_p * w_b)           # in-kernel bf16 copy of x
    tm = max((budget - fixed) // per_row, _SUBLANE)
    tm = min(tm, tm_max, m)
    if m > 2 * _SUBLANE:
        tm = min(tm, _cdiv(m, 2))        # >= 2 grid steps: both v7x TCs get work
    if tm >= m:
        tm = m                           # single full-extent block (always legal)
    else:
        tm = max(_SUBLANE, (tm // _SUBLANE) * _SUBLANE)
    grid_m = _cdiv(m, tm)

    est = fixed + tm * per_row + (1 << 20)
    vmem_limit = int(min(vmem_cap, max(est + (8 << 20), 32 * 1024 * 1024)))

    out = pl.pallas_call(
        _mlp_kernel,
        out_shape=jax.ShapeDtypeStruct((m, d_out_p), orig_dtype),
        grid_spec=pltpu.PrefetchScalarGridSpec(
            num_scalar_prefetch=0,
            grid=(grid_m, grid_h),
            in_specs=[
                pl.BlockSpec((tm, d_in_p), lambda i, h: (i, 0)),    # x row tile (resident across h)
                pl.BlockSpec((d_in_p, th), lambda i, h: (0, h)),    # w1 hidden slice
                pl.BlockSpec((1, th), lambda i, h: (0, h)),         # b1 hidden slice
                pl.BlockSpec((th, d_out_p), lambda i, h: (h, 0)),   # w2 hidden slice
                pl.BlockSpec((1, d_out_p), lambda i, h: (0, 0)),    # b2 (resident)
            ],
            out_specs=pl.BlockSpec((tm, d_out_p), lambda i, h: (i, 0)),
            scratch_shapes=[pltpu.VMEM((tm, d_out_p), jnp.float32)],
        ),
        compiler_params=pltpu.CompilerParams(
            dimension_semantics=("parallel", "arbitrary"),
            vmem_limit_bytes=vmem_limit,
        ),
    )(x_p, w1_p, b1_p, w2_p, b2_p)

    if d_out_p != d_out:
        out = out[:, :d_out]
    return out.reshape(*lead, d_out)


class Mlp:
    """JAX/Pallas port of the PyTorch Mlp (fc1 -> GELU -> drop -> fc2 -> drop)."""

    def __init__(self, in_features, hidden_features=None, out_features=None,
                 drop=0.0, *, key=None, param_dtype=jnp.bfloat16):
        out_features = out_features or in_features
        hidden_features = hidden_features or in_features
        self.in_features = in_features
        self.hidden_features = hidden_features
        self.out_features = out_features
        self.drop = drop
        # TODO(synk): dropout with p > 0 is not implemented (default p=0.0 is identity).

        if key is None:
            key = jax.random.PRNGKey(0)
        k1, k2, k3, k4 = jax.random.split(key, 4)
        bound1 = 1.0 / math.sqrt(in_features)
        bound2 = 1.0 / math.sqrt(hidden_features)
        # Stored as (in, out) so the kernel computes x @ W (== x @ W_pt.T).
        # Weights cast to bf16 ONCE here (MXU operand dtype); biases stay f32
        # since they are added to the f32 accumulators.
        self.w1 = jax.random.uniform(k1, (in_features, hidden_features), jnp.float32,
                                     -bound1, bound1).astype(param_dtype)
        self.b1 = jax.random.uniform(k2, (hidden_features,), jnp.float32, -bound1, bound1)
        self.w2 = jax.random.uniform(k3, (hidden_features, out_features), jnp.float32,
                                     -bound2, bound2).astype(param_dtype)
        self.b2 = jax.random.uniform(k4, (out_features,), jnp.float32, -bound2, bound2)

    def __call__(self, x, *, tm_max=1024):
        assert self.drop == 0.0, "dropout > 0 not supported in the Pallas kernel"
        return mlp_forward(x, self.w1, self.b1, self.w2, self.b2, tm_max=tm_max)


def _reference(x, w1, b1, w2, b2):
    # Mirrors the kernel's numerics: bf16 operands, f32 accumulation, tanh GELU.
    xf = x.astype(w1.dtype).astype(jnp.float32)
    h = xf @ w1.astype(jnp.float32) + b1.astype(jnp.float32)
    h = _gelu_tanh(h)
    hf = h.astype(w2.dtype).astype(jnp.float32)
    return hf @ w2.astype(jnp.float32) + b2.astype(jnp.float32)


if __name__ == "__main__":
    key = jax.random.PRNGKey(0)
    k_x1, k_m1, k_x2, k_m2 = jax.random.split(key, 4)

    # Config A: lane-aligned dims (no padding path), 2 row tiles.
    B, N, d, hdim = 2, 128, 128, 256
    x = jax.random.normal(k_x1, (B, N, d), jnp.float32)
    mlp = Mlp(d, hidden_features=hdim, key=k_m1)
    out = jax.block_until_ready(mlp(x))
    ref = _reference(x, mlp.w1, mlp.b1, mlp.w2, mlp.b2)
    assert out.shape == (B, N, d), out.shape
    err = float(jnp.max(jnp.abs(out - ref)))
    assert err < 2e-3, f"config A mismatch vs reference: {err}"

    # Config B: unaligned dims (exercises the zero-padding / slicing path).
    B2, N2, d2, h2 = 2, 40, 32, 72
    x2 = jax.random.normal(k_x2, (B2, N2, d2), jnp.float32)
    mlp2 = Mlp(d2, hidden_features=h2, out_features=48, key=k_m2)
    out2 = jax.block_until_ready(mlp2(x2))
    ref2 = _reference(x2, mlp2.w1, mlp2.b1, mlp2.w2, mlp2.b2)
    assert out2.shape == (B2, N2, 48), out2.shape
    err2 = float(jnp.max(jnp.abs(out2 - ref2)))
    assert err2 < 2e-3, f"config B mismatch vs reference: {err2}"

    print("KERNEL_OK")
</pallas_src>

<mosaic_0001>
module attributes {stable_mosaic.version = 11 : i64} {
  func.func @_mlp_kernel(%arg0: i32, %arg1: i32, %arg2: memref<128x128xf32, #tpu.memory_space<vmem>>, %arg3: memref<128x256xbf16, #tpu.memory_space<vmem>>, %arg4: memref<1x256xf32, #tpu.memory_space<vmem>>, %arg5: memref<256x128xbf16, #tpu.memory_space<vmem>>, %arg6: memref<1x128xf32, #tpu.memory_space<vmem>>, %arg7: memref<128x128xf32, #tpu.memory_space<vmem>>, %arg8: memref<128x128xf32, #tpu.memory_space<vmem>>) attributes {dimension_semantics = [#tpu.dimension_semantics<parallel>, #tpu.dimension_semantics<arbitrary>], iteration_bounds = array<i64: 2, 1>, scalar_prefetch = 0 : i64, scratch_operands = 1 : i64, tpu.core_type = #tpu.core_type<tc>, window_params = [{transform_indices = @transform_0, window_bounds = array<i64: 128, 128>}, {transform_indices = @transform_1, window_bounds = array<i64: 128, 256>}, {transform_indices = @transform_2, window_bounds = array<i64: 1, 256>}, {transform_indices = @transform_3, window_bounds = array<i64: 256, 128>}, {pipeline_mode = #tpu.pipeline_mode<synchronous>, transform_indices = @transform_4, window_bounds = array<i64: 1, 128>}, {transform_indices = @transform_5, window_bounds = array<i64: 128, 128>}]} {
    %c0_i32 = arith.constant 0 : i32
    %0 = arith.cmpi eq, %arg1, %c0_i32 : i32
    %1 = arith.extui %0 : i1 to i32
    %c0_i32_0 = arith.constant 0 : i32
    %2 = arith.cmpi ne, %1, %c0_i32_0 : i32
    scf.if %2 {
      %cst_19 = arith.constant 0.000000e+00 : f32
      %32 = vector.broadcast %cst_19 : f32 to vector<128x128xf32>
      %c0_20 = arith.constant 0 : index
      %c0_21 = arith.constant 0 : index
      %33 = vector.load %arg8[%c0_20, %c0_21] : memref<128x128xf32, #tpu.memory_space<vmem>>, vector<128x128xf32>
      tpu.vector_store %arg8[%c0_20, %c0_21], %32 {strides = array<i32>} : memref<128x128xf32, #tpu.memory_space<vmem>>, vector<128x128xf32>,
    } else {
    }
    %c0 = arith.constant 0 : index
    %c0_1 = arith.constant 0 : index
    %3 = vector.load %arg2[%c0, %c0_1] : memref<128x128xf32, #tpu.memory_space<vmem>>, vector<128x128xf32>
    %4 = arith.truncf %3 : vector<128x128xf32> to vector<128x128xbf16>
    %c0_2 = arith.constant 0 : index
    %c0_3 = arith.constant 0 : index
    %5 = vector.load %arg3[%c0_2, %c0_3] : memref<128x256xbf16, #tpu.memory_space<vmem>>, vector<128x256xbf16>
    %cst = arith.constant dense<0.000000e+00> : vector<128x256xf32>
    %6 = tpu.matmul %4, %5, %cst {dimension_numbers = #tpu.dot_dimension_numbers<[1], [0], [0], [1], [0, 0, 1, 1], [], []>} : vector<128x128xbf16>, vector<128x256xbf16>, vector<128x256xf32> -> vector<128x256xf32>
    %c0_4 = arith.constant 0 : index
    %c0_5 = arith.constant 0 : index
    %7 = vector.load %arg4[%c0_4, %c0_5] : memref<1x256xf32, #tpu.memory_space<vmem>>, vector<1x256xf32>
    %8 = vector.broadcast %7 : vector<1x256xf32> to vector<128x256xf32>
    %9 = arith.addf %6, %8 : vector<128x256xf32>
    %cst_6 = arith.constant 5.000000e-01 : f32
    %10 = vector.broadcast %cst_6 : f32 to vector<128x256xf32>
    %11 = arith.mulf %10, %9 : vector<128x256xf32>
    %cst_7 = arith.constant 4.471500e-02 : f32
    %12 = vector.broadcast %cst_7 : f32 to vector<128x256xf32>
    %13 = arith.mulf %12, %9 : vector<128x256xf32>
    %14 = arith.mulf %13, %9 : vector<128x256xf32>
    %15 = arith.mulf %14, %9 : vector<128x256xf32>
    %16 = arith.addf %9, %15 : vector<128x256xf32>
    %cst_8 = arith.constant 0.797884583 : f32
    %17 = vector.broadcast %cst_8 : f32 to vector<128x256xf32>
    %18 = arith.mulf %17, %16 : vector<128x256xf32>
    %19 = math.tanh %18 : vector<128x256xf32>
    %cst_9 = arith.constant 1.000000e+00 : f32
    %20 = vector.broadcast %cst_9 : f32 to vector<128x256xf32>
    %21 = arith.addf %20, %19 : vector<128x256xf32>
    %22 = arith.mulf %11, %21 : vector<128x256xf32>
    %c0_10 = arith.constant 0 : index
    %c0_11 = arith.constant 0 : index
    %23 = vector.load %arg8[%c0_10, %c0_11] : memref<128x128xf32, #tpu.memory_space<vmem>>, vector<128x128xf32>
    %24 = arith.truncf %22 : vector<128x256xf32> to vector<128x256xbf16>
    %c0_12 = arith.constant 0 : index
    %c0_13 = arith.constant 0 : index
    %25 = vector.load %arg5[%c0_12, %c0_13] : memref<256x128xbf16, #tpu.memory_space<vmem>>, vector<256x128xbf16>
    %cst_14 = arith.constant dense<0.000000e+00> : vector<128x128xf32>
    %26 = tpu.matmul %24, %25, %cst_14 {dimension_numbers = #tpu.dot_dimension_numbers<[1], [0], [0], [1], [0, 0, 1, 1], [], []>} : vector<128x256xbf16>, vector<256x128xbf16>, vector<128x128xf32> -> vector<128x128xf32>
    %27 = arith.addf %23, %26 : vector<128x128xf32>
    %c0_15 = arith.constant 0 : index
    %c0_16 = arith.constant 0 : index
    %28 = vector.load %arg8[%c0_15, %c0_16] : memref<128x128xf32, #tpu.memory_space<vmem>>, vector<128x128xf32>
    tpu.vector_store %arg8[%c0_15, %c0_16], %27 {strides = array<i32>} : memref<128x128xf32, #tpu.memory_space<vmem>>, vector<128x128xf32>,
    %c0_i32_17 = arith.constant 0 : i32
    %29 = arith.cmpi eq, %arg1, %c0_i32_17 : i32
    %30 = arith.extui %29 : i1 to i32
    %c0_i32_18 = arith.constant 0 : i32
    %31 = arith.cmpi ne, %30, %c0_i32_18 : i32
    scf.if %31 {
      %c0_19 = arith.constant 0 : index
      %c0_20 = arith.constant 0 : index
      %32 = vector.load %arg8[%c0_19, %c0_20] : memref<128x128xf32, #tpu.memory_space<vmem>>, vector<128x128xf32>
      %c0_21 = arith.constant 0 : index
      %c0_22 = arith.constant 0 : index
      %33 = vector.load %arg6[%c0_21, %c0_22] : memref<1x128xf32, #tpu.memory_space<vmem>>, vector<1x128xf32>
      %34 = vector.broadcast %33 : vector<1x128xf32> to vector<128x128xf32>
      %35 = arith.addf %32, %34 : vector<128x128xf32>
      %c0_23 = arith.constant 0 : index
      %c0_24 = arith.constant 0 : index
      %36 = vector.load %arg7[%c0_23, %c0_24] : memref<128x128xf32, #tpu.memory_space<vmem>>, vector<128x128xf32>
      tpu.vector_store %arg7[%c0_23, %c0_24], %35 {strides = array<i32>} : memref<128x128xf32, #tpu.memory_space<vmem>>, vector<128x128xf32>,
    } else {
    }
    return
  }
  func.func @transform_0(%arg0: i32, %arg1: i32) -> (i32, i32) {
    %c0_i32 = arith.constant 0 : i32
    %c0_i32_0 = arith.constant 0 : i32
    return %arg0, %c0_i32 : i32, i32
  }
  func.func @transform_1(%arg0: i32, %arg1: i32) -> (i32, i32) {
    %c0_i32 = arith.constant 0 : i32
    %c0_i32_0 = arith.constant 0 : i32
    return %c0_i32, %arg1 : i32, i32
  }
  func.func @transform_2(%arg0: i32, %arg1: i32) -> (i32, i32) {
    %c0_i32 = arith.constant 0 : i32
    %c0_i32_0 = arith.constant 0 : i32
    return %c0_i32, %arg1 : i32, i32
  }
  func.func @transform_3(%arg0: i32, %arg1: i32) -> (i32, i32) {
    %c0_i32 = arith.constant 0 : i32
    %c0_i32_0 = arith.constant 0 : i32
    return %arg1, %c0_i32 : i32, i32
  }
  func.func @transform_4(%arg0: i32, %arg1: i32) -> (i32, i32) {
    %c0_i32 = arith.constant 0 : i32
    %c0_i32_0 = arith.constant 0 : i32
    %c0_i32_1 = arith.constant 0 : i32
    return %c0_i32, %c0_i32_0 : i32, i32
  }
  func.func @transform_5(%arg0: i32, %arg1: i32) -> (i32, i32) {
    %c0_i32 = arith.constant 0 : i32
    %c0_i32_0 = arith.constant 0 : i32
    return %arg0, %c0_i32 : i32, i32
  }
}

</mosaic_0001>

<llo_original>
// kernel: tpu_custom_call.1
$region0: #{tpu_custom_call.1}
  #allocation0 [shape = 'u32[]', space=smem, size = 0x4, offset = 0x4, fixed_abs, tag = 'smem constant byte address 0x4 - core index']
  #allocation1 [shape = 'u32[144,128]{1,0:T(1,128)}', space=vmem, size = 0x12000, scoped, tag = 'internal scratch']
  #allocation2 [shape = 'f32[128,128]{1,0:T(8,128)}', space=vmem, size = 0x10000, scoped, tag = 'scratch operand']
  %s0 = inlined_call_operand.hbm [shape: f32[256,128], index: 0, kind: input, shape index: {}]
  %s1 = inlined_call_operand.hbm [shape: bf16[128,256], index: 1, kind: input, shape index: {}]
  %s2 = inlined_call_operand.vmem [shape: f32[1,256], index: 2, kind: input, shape index: {}]
  %s3 = inlined_call_operand.hbm [shape: bf16[256,128], index: 3, kind: input, shape index: {}]
  %s4 = inlined_call_operand.vmem [shape: f32[1,128], index: 4, kind: input, shape index: {}]
  %s5 = inlined_call_operand.hbm [shape: f32[256,128], index: 5, kind: output, shape index: {}]
  %s6 = sld [smem:[#allocation0]]
  $region73: #{tpu_custom_call.1} parent=0
    _
  %s8 = ssub.s32 1, %s6
  %s9 = scalar_select 0, %s8, %s6
  $region1: #{tpu_custom_call.1} parent=0
    #allocation3 [shape = 'u8[131072]{0}', space=vmem, size = 0x20000, scoped, tag = 'input window, operand 0']
    #allocation4 [shape = 's32[2]{0}', space=sflag, size = 0x8, scoped, tag = 'scoped memory for tpu_custom_call.1']
    #allocation5 [shape = 's32[2]{0}', space=sflag, size = 0x8, scoped, tag = 'scoped memory for tpu_custom_call.1']
    #allocation6 [shape = 'u8[65536]{0}', space=vmem, size = 0x10000, scoped, tag = 'input window, operand 1, single buffered']
    #allocation7 [shape = 's32[1]{0}', space=sflag, size = 0x4, scoped, tag = 'scoped memory for tpu_custom_call.1']
    #allocation8 [shape = 'u8[65536]{0}', space=vmem, size = 0x10000, scoped, tag = 'input window, operand 3, single buffered']
    #allocation9 [shape = 'u8[131072]{0}', space=vmem, size = 0x20000, scoped, tag = 'output window, operand 0']
    %10 = vsyncpa [#allocation4], 0
    %s11 = scalar_lea.sflag [#allocation4], 1
    %12 = vsyncpa %s11, 0
    %13 = vsyncpa [#allocation7], 0
    %14 = vsyncpa [#allocation5], 0
    %s15 = scalar_lea.sflag [#allocation5], 1
    %16 = vsyncpa %s15, 0
    loop: start=0, step=1, limit=4
    $region2: #{tpu_custom_call.1} parent=1 // loop_pre_header
      _
    $region3: #{tpu_custom_call.1} parent=1 // loop_header
      %s18 = sphi 0, %s22
      %p19 = scmp.ge.s32.totalorder %s18, 4
      %s25 = sphi 0, %s37
      %s26 = sphi 0, %s33
      %s27 = sphi 0, %s25
      %s28 = sphi 0, %s26
      %s29 = sphi 0, %s27
      %s30 = sphi 0, %s28
      %s40 = sphi 0, %s42
      %s43 = sphi 0, %s40
      %s44 = sphi 0, %s43
      %s60 = sphi 0, %s44
      %s66 = sphi 0, %s68
      %s69 = sphi 0, %s66
      %s70 = sphi 0, %s69
      %s86 = sphi 0, %s70
      %s92 = sphi 0, %s94
      %s95 = sphi 0, %s92
      %s96 = sphi 0, %s95
      %s112 = sphi 0, %s96
      %s118 = sphi 0, %s120
      %s121 = sphi 0, %s118
      %s122 = sphi 0, %s121
      %s138 = sphi 0, %s122
      %s142 = sphi 0, %s142
      %s144 = sphi 0, %s142
      %s145 = sphi 0, %s144
      %s159 = sphi 0, %s145
      %s165 = sphi 0, %s167
      %s168 = sphi 0, %s165
      %s169 = sphi 0, %s168
      %s185 = sphi 0, %s169
    $region4: #{tpu_custom_call.1} parent=1 // loop_header_branch
      %21 = sbr.rel (%p19) target = $region8
    $region5: #{tpu_custom_call.1} parent=1 // loop_body
      %s23 = ssub.s32 %s18, 1
      %s24 = ssub.s32 %s18, 2
      %s31 = sadd.s32 1, %s26
      %p32 = scmp.ge.s32.totalorder %s31, 1
      %s33 = scalar_select %p32, 0, %s31
      %s34 = sadd.s32 1, %s25
      %s35 = scalar_select %p32, %s34, %s25
      %p36 = scmp.ge.s32.totalorder %s35, 2
      %s37 = scalar_select %p36, 0, %s35
      %s38 = ssub.s32 %s25, %s37
      %p39 = scmp.eq.s32.totalorder %s38, 0
      %s41 = sadd.s32 %s40, 1
      %s42 = scalar_select %p39, %s40, %s41
      %p45 = pneg %p39
      %p46 = scmp.eq.s32.totalorder %s18, 1
      %p47 = por %p45, %p46
      %p48 = scmp.ne.s32.totalorder %s40, %s43
      %p49 = scmp.eq.s32.totalorder %s18, 0
      %p50 = por %p48, %p49
      %p51 = scmp.ne.s32.totalorder %s40, %s43
      %p52 = scmp.eq.s32.totalorder %s23, 1
      %p53 = por %p51, %p52
      %p54 = scmp.ne.s32.totalorder %s43, %s44
      %p55 = scmp.eq.s32.totalorder %s23, 0
      %p56 = por %p54, %p55
      %p57 = scmp.ne.s32.totalorder %s43, %s44
      %p58 = scmp.eq.s32.totalorder %s24, 1
      %p59 = por %p57, %p58
      %p61 = scmp.ne.s32.totalorder %s44, %s60
      %p62 = scmp.eq.s32.totalorder %s24, 0
      %p63 = por %p61, %p62
      %s64 = ssub.s32 %s26, %s33
      %p65 = scmp.eq.s32.totalorder %s64, 0
      %s67 = sadd.s32 %s66, 1
      %s68 = scalar_select %p65, %s66, %s67
      %p71 = pneg %p65
      %p72 = scmp.eq.s32.totalorder %s18, 1
      %p73 = por %p71, %p72
      %p74 = scmp.ne.s32.totalorder %s66, %s69
      %p75 = scmp.eq.s32.totalorder %s18, 0
      %p76 = por %p74, %p75
      %p77 = scmp.ne.s32.totalorder %s66, %s69
      %p78 = scmp.eq.s32.totalorder %s23, 1
      %p79 = por %p77, %p78
      %p80 = scmp.ne.s32.totalorder %s69, %s70
      %p81 = scmp.eq.s32.totalorder %s23, 0
      %p82 = por %p80, %p81
      %p83 = scmp.ne.s32.totalorder %s69, %s70
      %p84 = scmp.eq.s32.totalorder %s24, 1
      %p85 = por %p83, %p84
      %p87 = scmp.ne.s32.totalorder %s70, %s86
      %p88 = scmp.eq.s32.totalorder %s24, 0
      %p89 = por %p87, %p88
      %s90 = ssub.s32 %s26, %s33
      %p91 = scmp.eq.s32.totalorder %s90, 0
      %s93 = sadd.s32 %s92, 1
      %s94 = scalar_select %p91, %s92, %s93
      %p97 = pneg %p91
      %p98 = scmp.eq.s32.totalorder %s18, 1
      %p99 = por %p97, %p98
      %p100 = scmp.ne.s32.totalorder %s92, %s95
      %p101 = scmp.eq.s32.totalorder %s18, 0
      %p102 = por %p100, %p101
      %p103 = scmp.ne.s32.totalorder %s92, %s95
      %p104 = scmp.eq.s32.totalorder %s23, 1
      %p105 = por %p103, %p104
      %p106 = scmp.ne.s32.totalorder %s95, %s96
      %p107 = scmp.eq.s32.totalorder %s23, 0
      %p108 = por %p106, %p107
      %p109 = scmp.ne.s32.totalorder %s95, %s96
      %p110 = scmp.eq.s32.totalorder %s24, 1
      %p111 = por %p109, %p110
      %p113 = scmp.ne.s32.totalorder %s96, %s112
      %p114 = scmp.eq.s32.totalorder %s24, 0
      %p115 = por %p113, %p114
      %s116 = ssub.s32 %s26, %s33
      %p117 = scmp.eq.s32.totalorder %s116, 0
      %s119 = sadd.s32 %s118, 1
      %s120 = scalar_select %p117, %s118, %s119
      %p123 = pneg %p117
      %p124 = scmp.eq.s32.totalorder %s18, 1
      %p125 = por %p123, %p124
      %p126 = scmp.ne.s32.totalorder %s118, %s121
      %p127 = scmp.eq.s32.totalorder %s18, 0
      %p128 = por %p126, %p127
      %p129 = scmp.ne.s32.totalorder %s118, %s121
      %p130 = scmp.eq.s32.totalorder %s23, 1
      %p131 = por %p129, %p130
      %p132 = scmp.ne.s32.totalorder %s121, %s122
      %p133 = scmp.eq.s32.totalorder %s23, 0
      %p134 = por %p132, %p133
      %p135 = scmp.ne.s32.totalorder %s121, %s122
      %p136 = scmp.eq.s32.totalorder %s24, 1
      %p137 = por %p135, %p136
      %p139 = scmp.ne.s32.totalorder %s122, %s138
      %p140 = scmp.eq.s32.totalorder %s24, 0
      %p141 = por %p139, %p140
      %s143 = sadd.s32 %s142, 1
      %p146 = scmp.eq.s32.totalorder %s18, 1
      %p147 = scmp.ne.s32.totalorder %s142, %s144
      %p148 = scmp.eq.s32.totalorder %s18, 0
      %p149 = por %p147, %p148
      %p150 = scmp.ne.s32.totalorder %s142, %s144
      %p151 = scmp.eq.s32.totalorder %s23, 1
      %p152 = por %p150, %p151
      %p153 = scmp.ne.s32.totalorder %s144, %s145
      %p154 = scmp.eq.s32.totalorder %s23, 0
      %p155 = por %p153, %p154
      %p156 = scmp.ne.s32.totalorder %s144, %s145
      %p157 = scmp.eq.s32.totalorder %s24, 1
      %p158 = por %p156, %p157
      %p160 = scmp.ne.s32.totalorder %s145, %s159
      %p161 = scmp.eq.s32.totalorder %s24, 0
      %p162 = por %p160, %p161
      %s163 = ssub.s32 %s25, %s37
      %p164 = scmp.eq.s32.totalorder %s163, 0
      %s166 = sadd.s32 %s165, 1
      %s167 = scalar_select %p164, %s165, %s166
      %p170 = pneg %p164
      %p171 = scmp.eq.s32.totalorder %s18, 1
      %p172 = por %p170, %p171
      %p173 = scmp.ne.s32.totalorder %s165, %s168
      %p174 = scmp.eq.s32.totalorder %s18, 0
      %p175 = por %p173, %p174
      %p176 = scmp.ne.s32.totalorder %s165, %s168
      %p177 = scmp.eq.s32.totalorder %s23, 1
      %p178 = por %p176, %p177
      %p179 = scmp.ne.s32.totalorder %s168, %s169
      %p180 = scmp.eq.s32.totalorder %s23, 0
      %p181 = por %p179, %p180
      %p182 = scmp.ne.s32.totalorder %s168, %s169
      %p183 = scmp.eq.s32.totalorder %s24, 1
      %p184 = por %p182, %p183
      %p186 = scmp.ne.s32.totalorder %s169, %s185
      %p187 = scmp.eq.s32.totalorder %s24, 0
      %p188 = por %p186, %p187
      %p189 = scmp.le.s32.totalorder 1, %s18
      %p190 = scmp.lt.s32.totalorder %s18, 3
      %p191 = pnand %p189, %p190
      %p192 = pneg %p191
      // Predicated region
      $region9: #{tpu_custom_call.1} parent=5 // pred_check
        _
      $region10: #{tpu_custom_call.1} parent=5 // pred_check_branch
        %194 = sbr.rel (%p191) target = $region12
      $region11: #{tpu_custom_call.1} parent=5 // pred_region
        %s195 = ssub.s32 %s18, 1
        // Predicated region
        $region13: #{tpu_custom_call.1} parent=11 // pred_check
          %p196 = pneg %p82
        $region14: #{tpu_custom_call.1} parent=11 // pred_check_branch
          %198 = sbr.rel (%p196) target = $region16
        $region15: #{tpu_custom_call.1} parent=11 // pred_region
          %s199 = smul.u32 2, %s28
          %s201 = ssub.s32 2048, 2048
          %202 = vsyncadd [#allocation7], %s201
          %s203 = smul.addr %s199, 64
          %s204 = scalar_lea.hbm %s1, %s203
          %s205 = sshll.u32 [#allocation6], 4
          %s206 = int_to_ptr.vmem [resolvable:$true] %s205
          %211 = dma.hbm_to_vmem [thread:$0]  %s204, 2048, %s206, [#allocation7], 128, 128, 8
        $region16: #{tpu_custom_call.1} parent=11 // pred_fallthru
          _
        // Predicated region
        $region17: #{tpu_custom_call.1} parent=11 // pred_check
          %p212 = pneg %p108
        $region18: #{tpu_custom_call.1} parent=11 // pred_check_branch
          %214 = sbr.rel (%p212) target = $region20
        $region19: #{tpu_custom_call.1} parent=11 // pred_region
          %s215 = smul.u32 2, %s28
          %p216 = scmp.lt.s32.totalorder %s215, 1
          %s217 = scalar_select %p216, %s215, 1
          %s218 = scalar_lea.vmem %s2, %s217
          %s219 = smul.u32 2, %s28
        $region20: #{tpu_custom_call.1} parent=11 // pred_fallthru
          _
        // Predicated region
        $region21: #{tpu_custom_call.1} parent=11 // pred_check
          %p220 = pneg %p134
        $region22: #{tpu_custom_call.1} parent=11 // pred_check_branch
          %222 = sbr.rel (%p220) target = $region24
        $region23: #{tpu_custom_call.1} parent=11 // pred_region
          %s223 = smul.u32 32, %s28
          %s225 = ssub.s32 2048, 2048
          %226 = vsyncadd [#allocation7], %s225
          %s227 = smul.addr %s223, 64
          %s228 = scalar_lea.hbm %s3, %s227
          %s229 = sshll.u32 [#allocation8], 4
          %s230 = int_to_ptr.vmem [resolvable:$true] %s229
          %235 = dma.hbm_to_vmem [thread:$0]  %s228, 2048, %s230, [#allocation7], 64, 64, 4
        $region24: #{tpu_custom_call.1} parent=11 // pred_fallthru
          _
        // Predicated region
        $region25: #{tpu_custom_call.1} parent=11 // pred_check
          %p236 = pneg %p155
        $region26: #{tpu_custom_call.1} parent=11 // pred_check_branch
          %238 = sbr.rel (%p236) target = $region28
        $region27: #{tpu_custom_call.1} parent=11 // pred_region
          _
        $region28: #{tpu_custom_call.1} parent=11 // pred_fallthru
          _
      $region12: #{tpu_custom_call.1} parent=5 // pred_fallthru
        _
      %p239 = scmp.lt.s32.totalorder %s18, 2
      // Predicated region
      $region29: #{tpu_custom_call.1} parent=5 // pred_check
        %p240 = pneg %p239
      $region30: #{tpu_custom_call.1} parent=5 // pred_check_branch
        %242 = sbr.rel (%p240) target = $region32
      $region31: #{tpu_custom_call.1} parent=5 // pred_region
        // Predicated region
        $region33: #{tpu_custom_call.1} parent=31 // pred_check
          %p243 = pneg %p50
        $region34: #{tpu_custom_call.1} parent=31 // pred_check_branch
          %245 = sbr.rel (%p243) target = $region36
        $region35: #{tpu_custom_call.1} parent=31 // pred_region
          %s246 = sand.u32 %s40, 1
          %s247 = scalar_lea.sflag [#allocation4], %s246
          %s248 = sand.u32 %s40, 1
          %s249 = smul.addr %s248, 128
          %s250 = scalar_lea.vmem [#allocation3], %s249
          %s251 = smul.u32 16, %s25
          %s253 = ssub.s32 2048, 2048
          %254 = vsyncadd %s247, %s253
          %s255 = smul.addr %s251, 128
          %s256 = scalar_lea.hbm %s0, %s255
          %s257 = sshll.u32 %s250, 4
          %s258 = int_to_ptr.vmem [resolvable:$true] %s257
          %263 = dma.hbm_to_vmem [thread:$0]  %s256, 2048, %s258, %s247, 128, 128, 8
        $region36: #{tpu_custom_call.1} parent=31 // pred_fallthru
          _
      $region32: #{tpu_custom_call.1} parent=5 // pred_fallthru
        _
      %p264 = scmp.le.s32.totalorder 1, %s18
      %p265 = scmp.lt.s32.totalorder %s18, 3
      %p266 = pnand %p264, %p265
      %p267 = pneg %p266
      // Predicated region
      $region37: #{tpu_custom_call.1} parent=5 // pred_check
        _
      $region38: #{tpu_custom_call.1} parent=5 // pred_check_branch
        %269 = sbr.rel (%p266) target = $region40
      $region39: #{tpu_custom_call.1} parent=5 // pred_region
        %s270 = ssub.s32 %s18, 1
        %s271 = sand.u32 %s43, 1
        %s272 = scalar_lea.sflag [#allocation4], %s271
        %s273 = sand.u32 %s43, 1
        %s274 = smul.addr %s273, 128
        %s275 = scalar_lea.vmem [#allocation3], %s274
        // Predicated region
        $region41: #{tpu_custom_call.1} parent=39 // pred_check
          %p276 = pneg %p56
        $region42: #{tpu_custom_call.1} parent=39 // pred_check_branch
          %278 = sbr.rel (%p276) target = $region44
        $region43: #{tpu_custom_call.1} parent=39 // pred_region
          %279 = dma.done %s272, 2048
        $region44: #{tpu_custom_call.1} parent=39 // pred_fallthru
          _
        // Predicated region
        $region45: #{tpu_custom_call.1} parent=39 // pred_check
          %p280 = pneg %p82
        $region46: #{tpu_custom_call.1} parent=39 // pred_check_branch
          %282 = sbr.rel (%p280) target = $region48
        $region47: #{tpu_custom_call.1} parent=39 // pred_region
          %283 = dma.done [#allocation7], 2048
        $region48: #{tpu_custom_call.1} parent=39 // pred_fallthru
          _
        // Predicated region
        $region49: #{tpu_custom_call.1} parent=39 // pred_check
          %p284 = pneg %p134
        $region50: #{tpu_custom_call.1} parent=39 // pred_check_branch
          %286 = sbr.rel (%p284) target = $region52
        $region51: #{tpu_custom_call.1} parent=39 // pred_region
          %287 = dma.done [#allocation7], 2048
        $region52: #{tpu_custom_call.1} parent=39 // pred_fallthru
          _
        %s288 = sand.u32 %s43, 1
        %s289 = scalar_lea.sflag [#allocation4], %s288
        %s290 = sand.u32 %s43, 1
        %s291 = smul.addr %s290, 128
        %s292 = scalar_lea.vmem [#allocation3], %s291
        %p293 = pneg %p56
        %p294 = pneg %p53
        %p295 = pneg %p82
        %p296 = pneg %p79
        %s297 = smul.u32 2, %s28
        %p298 = scmp.lt.s32.totalorder %s297, 1
        %s299 = scalar_select %p298, %s297, 1
        %s300 = scalar_lea.vmem %s2, %s299
        %p301 = pneg %p108
        %p302 = pneg %p105
        %p303 = pneg %p134
        %p304 = pneg %p131
        %p305 = pneg %p155
        %p306 = pneg %p152
        %p307 = pneg %p181
        %p308 = pneg %p178
        %s309 = sand.u32 %s168, 1
        %s310 = scalar_lea.sflag [#allocation5], %s309
        %s311 = sand.u32 %s168, 1
        %s312 = smul.addr %s311, 128
        %s313 = scalar_lea.vmem [#allocation9], %s312
        %s314 = smul.u32 16, %s27
        %s315 = smul.u32 2, %s28
        %s316 = smul.u32 2, %s28
        %p317 = scmp.lt.s32.totalorder %s316, 1
        %s318 = scalar_select %p317, %s316, 1
        %s319 = scalar_lea.vmem %s2, %s318
        %s320 = smul.u32 2, %s28
        %s321 = smul.u32 32, %s28
        %s322 = smul.u32 16, %s27
        %p324 = scmp.eq.s32.totalorder %s28, 0
        // Predicated region
        $region53: #{tpu_custom_call.1} parent=39 // pred_check
          %p325 = pneg %p324
        $region54: #{tpu_custom_call.1} parent=39 // pred_check_branch
          %327 = sbr.rel (%p325) target = $region56
        $region55: #{tpu_custom_call.1} parent=39 // pred_region
          %328 = vst [vmem:[#allocation2] sm:$0xff] 0.0
          %329 = vst [vmem:[#allocation2 + $0x8] sm:$0xff] 0.0
          %330 = vst [vmem:[#allocation2 + $0x10] sm:$0xff] 0.0
          %331 = vst [vmem:[#allocation2 + $0x18] sm:$0xff] 0.0
          %332 = vst [vmem:[#allocation2 + $0x20] sm:$0xff] 0.0
          %333 = vst [vmem:[#allocation2 + $0x28] sm:$0xff] 0.0
          %334 = vst [vmem:[#allocation2 + $0x30] sm:$0xff] 0.0
          %335 = vst [vmem:[#allocation2 + $0x38] sm:$0xff] 0.0
          %336 = vst [vmem:[#allocation2 + $0x40] sm:$0xff] 0.0
          %337 = vst [vmem:[#allocation2 + $0x48] sm:$0xff] 0.0
          %338 = vst [vmem:[#allocation2 + $0x50] sm:$0xff] 0.0
          %339 = vst [vmem:[#allocation2 + $0x58] sm:$0xff] 0.0
          %340 = vst [vmem:[#allocation2 + $0x60] sm:$0xff] 0.0
          %341 = vst [vmem:[#allocation2 + $0x68] sm:$0xff] 0.0
          %342 = vst [vmem:[#allocation2 + $0x70] sm:$0xff] 0.0
          %343 = vst [vmem:[#allocation2 + $0x78] sm:$0xff] 0.0
        $region56: #{tpu_custom_call.1} parent=39 // pred_fallthru
          _
        %v344 = vld [vmem:[%s275] sm:$0xff]
        %v345 = vld [vmem:[%s275 + $0x8] sm:$0xff]
        %v346 = vld [vmem:[%s275 + $0x10] sm:$0xff]
        %v347 = vld [vmem:[%s275 + $0x18] sm:$0xff]
        %v348 = vld [vmem:[%s275 + $0x20] sm:$0xff]
        %v349 = vld [vmem:[%s275 + $0x28] sm:$0xff]
        %v350 = vld [vmem:[%s275 + $0x30] sm:$0xff]
        %v351 = vld [vmem:[%s275 + $0x38] sm:$0xff]
        %v352 = vld [vmem:[%s275 + $0x40] sm:$0xff]
        %v353 = vld [vmem:[%s275 + $0x48] sm:$0xff]
        %v354 = vld [vmem:[%s275 + $0x50] sm:$0xff]
        %v355 = vld [vmem:[%s275 + $0x58] sm:$0xff]
        %v356 = vld [vmem:[%s275 + $0x60] sm:$0xff]
        %v357 = vld [vmem:[%s275 + $0x68] sm:$0xff]
        %v358 = vld [vmem:[%s275 + $0x70] sm:$0xff]
        %v359 = vld [vmem:[%s275 + $0x78] sm:$0xff]
        %v360 = vpack.c.bf16 %v345, %v344
        %v361 = vpack.c.bf16 %v347, %v346
        %v362 = vpack.c.bf16 %v349, %v348
        %v363 = vpack.c.bf16 %v351, %v350
        %v364 = vpack.c.bf16 %v353, %v352
        %v365 = vpack.c.bf16 %v355, %v354
        %v366 = vpack.c.bf16 %v357, %v356
        %v367 = vpack.c.bf16 %v359, %v358
        %v368 = vld [vmem:[#allocation6] sm:$0xff]
        %v369 = vld [vmem:[#allocation6 + $0x8] sm:$0xff]
        %v370 = vld [vmem:[#allocation6 + $0x10] sm:$0xff]
        %v371 = vld [vmem:[#allocation6 + $0x18] sm:$0xff]
        %v372 = vld [vmem:[#allocation6 + $0x20] sm:$0xff]
        %v373 = vld [vmem:[#allocation6 + $0x28] sm:$0xff]
        %v374 = vld [vmem:[#allocation6 + $0x30] sm:$0xff]
        %v375 = vld [vmem:[#allocation6 + $0x38] sm:$0xff]
        %v376 = vld [vmem:[#allocation6 + $0x40] sm:$0xff]
        %v377 = vld [vmem:[#allocation6 + $0x48] sm:$0xff]
        %v378 = vld [vmem:[#allocation6 + $0x50] sm:$0xff]
        %v379 = vld [vmem:[#allocation6 + $0x58] sm:$0xff]
        %v380 = vld [vmem:[#allocation6 + $0x60] sm:$0xff]
        %v381 = vld [vmem:[#allocation6 + $0x68] sm:$0xff]
        %v382 = vld [vmem:[#allocation6 + $0x70] sm:$0xff]
        %v383 = vld [vmem:[#allocation6 + $0x78] sm:$0xff]
        %v384 = vld [vmem:[%s319] sm:$0x3]
        %v386 = vlaneseq
        %v387 = vshrl.u32 %v386, 7
        %v388 = vsub.s32 0, %v387
        %v389 = vrot.slane %v384, %v388
        %v390 = vlaneseq
        %v391 = vshrl.u32 %v390, 7
        %v392 = vsub.s32 1, %v391
        %v393 = vrot.slane %v384, %v392
        %v412 = vunpack.c.l.b16 %v368
        %v413 = vunpack.c.h.b16 %v368
        %v414 = vunpack.c.l.b16 %v369
        %v415 = vunpack.c.h.b16 %v369
        %v416 = vunpack.c.l.b16 %v370
        %v417 = vunpack.c.h.b16 %v370
        %v418 = vunpack.c.l.b16 %v371
        %v419 = vunpack.c.h.b16 %v371
        %v420 = vunpack.c.l.b16 %v372
        %v421 = vunpack.c.h.b16 %v372
        %v422 = vunpack.c.l.b16 %v373
        %v423 = vunpack.c.h.b16 %v373
        %v424 = vunpack.c.l.b16 %v374
        %v425 = vunpack.c.h.b16 %v374
        %v426 = vunpack.c.l.b16 %v375
        %v427 = vunpack.c.h.b16 %v375
        %v428 = vunpack.c.l.b16 %v376
        %v429 = vunpack.c.h.b16 %v376
        %v430 = vunpack.c.l.b16 %v377
        %v431 = vunpack.c.h.b16 %v377
        %v432 = vunpack.c.l.b16 %v378
        %v433 = vunpack.c.h.b16 %v378
        %v434 = vunpack.c.l.b16 %v379
        %v435 = vunpack.c.h.b16 %v379
        %v436 = vunpack.c.l.b16 %v380
        %v437 = vunpack.c.h.b16 %v380
        %v438 = vunpack.c.l.b16 %v381
        %v439 = vunpack.c.h.b16 %v381
        %v440 = vunpack.c.l.b16 %v382
        %v441 = vunpack.c.h.b16 %v382
        %v442 = vunpack.c.l.b16 %v383
        %v443 = vunpack.c.h.b16 %v383
        %v444 = vpack.c.b16 %v414, %v412
        %v445 = vpack.c.b16 %v415, %v413
        %v446 = vpack.c.b16 %v418, %v416
        %v447 = vpack.c.b16 %v419, %v417
        %v448 = vpack.c.b16 %v422, %v420
        %v449 = vpack.c.b16 %v423, %v421
        %v450 = vpack.c.b16 %v426, %v424
        %v451 = vpack.c.b16 %v427, %v425
        %v452 = vpack.c.b16 %v430, %v428
        %v453 = vpack.c.b16 %v431, %v429
        %v454 = vpack.c.b16 %v434, %v432
        %v455 = vpack.c.b16 %v435, %v433
        %v456 = vpack.c.b16 %v438, %v436
        %v457 = vpack.c.b16 %v439, %v437
        %v458 = vpack.c.b16 %v442, %v440
        %v459 = vpack.c.b16 %v443, %v441
        %476 = vmatprep.subr.bf16.mxu0 %v459
        %477 = vmatpush1.bf16.msra.mxu0 %v458
        %478 = vmatprep.subr.bf16.mxu0 %v457
        %479 = vmatpush1.bf16.msra.mxu0 %v456
        %480 = vmatprep.subr.bf16.mxu0 %v455
        %481 = vmatpush1.bf16.msra.mxu0 %v454
        %482 = vmatprep.subr.bf16.mxu0 %v453
        %483 = vmatpush1.bf16.msra.mxu0 %v452
        %484 = vmatprep.subr.bf16.mxu0 %v451
        %485 = vmatpush1.bf16.msra.mxu0 %v450
        %486 = vmatprep.subr.bf16.mxu0 %v449
        %487 = vmatpush1.bf16.msra.mxu0 %v448
        %488 = vmatprep.subr.bf16.mxu0 %v447
        %489 = vmatpush1.bf16.msra.mxu0 %v446
        %490 = vmatprep.subr.bf16.mxu0 %v445
        %491 = vmatpush1.bf16.msra.mxu0 %v444
        %492 = vmatprep.subr.bf16.mxu0 0
        %493 = vmatpush2.bf16.msra.mxu0 0
        %494 = vmatprep.subr.bf16.mxu0 0
        %495 = vmatpush2.bf16.msra.mxu0 0
        %496 = vmatprep.subr.bf16.mxu0 0
        %497 = vmatpush2.bf16.msra.mxu0 0
        %498 = vmatprep.subr.bf16.mxu0 0
        %499 = vmatpush2.bf16.msra.mxu0 0
        %500 = vmatprep.subr.bf16.mxu0 0
        %501 = vmatpush2.bf16.msra.mxu0 0
        %502 = vmatprep.subr.bf16.mxu0 0
        %503 = vmatpush2.bf16.msra.mxu0 0
        %504 = vmatprep.subr.bf16.mxu0 0
        %505 = vmatpush2.bf16.msra.mxu0 0
        %506 = vmatprep.subr.bf16.mxu0 0
        %507 = vmatpush2.bf16.msra.mxu0 0
        %508 = vmatprep.mubr.bf16.mxu0 0
        %509 = vmatmul.mubr.bf16.gmra.mxu0 %v360
        %v510 = vpop.f32.mrf.mxu0
        %v511 = vadd.f32 %v389, %v510
        %v512 = vpop.f32.mrf.mxu0
        %v513 = vadd.f32 %v393, %v512
        %v514 = vpop.f32.mrf.mxu0
        %v515 = vadd.f32 %v389, %v514
        %v516 = vpop.f32.mrf.mxu0
        %v517 = vadd.f32 %v393, %v516
        %518 = vmatprep.mubr.bf16.mxu0 0
        %519 = vmatmul.mubr.bf16.gmra.mxu0 %v361
        %v520 = vpop.f32.mrf.mxu0
        %v521 = vadd.f32 %v389, %v520
        %v522 = vpop.f32.mrf.mxu0
        %v523 = vadd.f32 %v393, %v522
        %v524 = vpop.f32.mrf.mxu0
        %v525 = vadd.f32 %v389, %v524
        %v526 = vpop.f32.mrf.mxu0
        %v527 = vadd.f32 %v393, %v526
        %528 = vmatprep.mubr.bf16.mxu0 0
        %529 = vmatmul.mubr.bf16.gmra.mxu0 %v362
        %v530 = vpop.f32.mrf.mxu0
        %v531 = vadd.f32 %v389, %v530
        %v532 = vpop.f32.mrf.mxu0
        %v533 = vadd.f32 %v393, %v532
        %v534 = vpop.f32.mrf.mxu0
        %v535 = vadd.f32 %v389, %v534
        %v536 = vpop.f32.mrf.mxu0
        %v537 = vadd.f32 %v393, %v536
        %538 = vmatprep.mubr.bf16.mxu0 0
        %539 = vmatmul.mubr.bf16.gmra.mxu0 %v363
        %v540 = vpop.f32.mrf.mxu0
        %v541 = vadd.f32 %v389, %v540
        %v542 = vpop.f32.mrf.mxu0
        %v543 = vadd.f32 %v393, %v542
        %v544 = vpop.f32.mrf.mxu0
        %v545 = vadd.f32 %v389, %v544
        %v546 = vpop.f32.mrf.mxu0
        %v547 = vadd.f32 %v393, %v546
        %548 = vmatprep.mubr.bf16.mxu0 0
        %549 = vmatmul.mubr.bf16.gmra.mxu0 %v364
        %v550 = vpop.f32.mrf.mxu0
        %v551 = vadd.f32 %v389, %v550
        %v552 = vpop.f32.mrf.mxu0
        %v553 = vadd.f32 %v393, %v552
        %v554 = vpop.f32.mrf.mxu0
        %v555 = vadd.f32 %v389, %v554
        %v556 = vpop.f32.mrf.mxu0
        %v557 = vadd.f32 %v393, %v556
        %558 = vmatprep.mubr.bf16.mxu0 0
        %559 = vmatmul.mubr.bf16.gmra.mxu0 %v365
        %v560 = vpop.f32.mrf.mxu0
        %v561 = vadd.f32 %v389, %v560
        %v562 = vpop.f32.mrf.mxu0
        %v563 = vadd.f32 %v393, %v562
        %v564 = vpop.f32.mrf.mxu0
        %v565 = vadd.f32 %v389, %v564
        %v566 = vpop.f32.mrf.mxu0
        %v567 = vadd.f32 %v393, %v566
        %568 = vmatprep.mubr.bf16.mxu0 0
        %569 = vmatmul.mubr.bf16.gmra.mxu0 %v366
        %v570 = vpop.f32.mrf.mxu0
        %v571 = vadd.f32 %v389, %v570
        %v572 = vpop.f32.mrf.mxu0
        %v573 = vadd.f32 %v393, %v572
        %v574 = vpop.f32.mrf.mxu0
        %v575 = vadd.f32 %v389, %v574
        %v576 = vpop.f32.mrf.mxu0
        %v577 = vadd.f32 %v393, %v576
        %578 = vmatprep.mubr.bf16.mxu0 0
        %579 = vmatmul.mubr.bf16.gmra.mxu0 %v367
        %v580 = vpop.f32.mrf.mxu0
        %v581 = vadd.f32 %v389, %v580
        %v582 = vpop.f32.mrf.mxu0
        %v583 = vadd.f32 %v393, %v582
        %v584 = vpop.f32.mrf.mxu0
        %v585 = vadd.f32 %v389, %v584
        %v586 = vpop.f32.mrf.mxu0
        %v587 = vadd.f32 %v393, %v586
        %588 = vdwg.mxu0
        %v589 = vmul.f32 %v511, 0.5
        %v590 = vmul.f32 %v513, 0.5
        %v591 = vmul.f32 %v515, 0.5
        %v592 = vmul.f32 %v517, 0.5
        %v593 = vmul.f32 %v521, 0.5
        %v594 = vmul.f32 %v523, 0.5
        %v595 = vmul.f32 %v525, 0.5
        %v596 = vmul.f32 %v527, 0.5
        %v597 = vmul.f32 %v531, 0.5
        %v598 = vmul.f32 %v533, 0.5
        %v599 = vmul.f32 %v535, 0.5
        %v600 = vmul.f32 %v537, 0.5
        %v601 = vmul.f32 %v541, 0.5
        %v602 = vmul.f32 %v543, 0.5
        %v603 = vmul.f32 %v545, 0.5
        %v604 = vmul.f32 %v547, 0.5
        %v605 = vmul.f32 %v551, 0.5
        %v606 = vmul.f32 %v553, 0.5
        %v607 = vmul.f32 %v555, 0.5
        %v608 = vmul.f32 %v557, 0.5
        %v609 = vmul.f32 %v561, 0.5
        %v610 = vmul.f32 %v563, 0.5
        %v611 = vmul.f32 %v565, 0.5
        %v612 = vmul.f32 %v567, 0.5
        %v613 = vmul.f32 %v571, 0.5
        %v614 = vmul.f32 %v573, 0.5
        %v615 = vmul.f32 %v575, 0.5
        %v616 = vmul.f32 %v577, 0.5
        %v617 = vmul.f32 %v581, 0.5
        %v618 = vmul.f32 %v583, 0.5
        %v619 = vmul.f32 %v585, 0.5
        %v620 = vmul.f32 %v587, 0.5
        %v621 = vmul.f32 %v511, 0.044715
        %v622 = vmul.f32 %v513, 0.044715
        %v623 = vmul.f32 %v515, 0.044715
        %v624 = vmul.f32 %v517, 0.044715
        %v625 = vmul.f32 %v521, 0.044715
        %v626 = vmul.f32 %v523, 0.044715
        %v627 = vmul.f32 %v525, 0.044715
        %v628 = vmul.f32 %v527, 0.044715
        %v629 = vmul.f32 %v531, 0.044715
        %v630 = vmul.f32 %v533, 0.044715
        %v631 = vmul.f32 %v535, 0.044715
        %v632 = vmul.f32 %v537, 0.044715
        %v633 = vmul.f32 %v541, 0.044715
        %v634 = vmul.f32 %v543, 0.044715
        %v635 = vmul.f32 %v545, 0.044715
        %v636 = vmul.f32 %v547, 0.044715
        %v637 = vmul.f32 %v551, 0.044715
        %v638 = vmul.f32 %v553, 0.044715
        %v639 = vmul.f32 %v555, 0.044715
        %v640 = vmul.f32 %v557, 0.044715
        %v641 = vmul.f32 %v561, 0.044715
        %v642 = vmul.f32 %v563, 0.044715
        %v643 = vmul.f32 %v565, 0.044715
        %v644 = vmul.f32 %v567, 0.044715
        %v645 = vmul.f32 %v571, 0.044715
        %v646 = vmul.f32 %v573, 0.044715
        %v647 = vmul.f32 %v575, 0.044715
        %v648 = vmul.f32 %v577, 0.044715
        %v649 = vmul.f32 %v581, 0.044715
        %v650 = vmul.f32 %v583, 0.044715
        %v651 = vmul.f32 %v585, 0.044715
        %v652 = vmul.f32 %v587, 0.044715
        %v653 = vmul.f32 %v621, %v511
        %v654 = vmul.f32 %v622, %v513
        %v655 = vmul.f32 %v623, %v515
        %v656 = vmul.f32 %v624, %v517
        %v657 = vmul.f32 %v625, %v521
        %v658 = vmul.f32 %v626, %v523
        %v659 = vmul.f32 %v627, %v525
        %v660 = vmul.f32 %v628, %v527
        %v661 = vmul.f32 %v629, %v531
        %v662 = vmul.f32 %v630, %v533
        %v663 = vmul.f32 %v631, %v535
        %v664 = vmul.f32 %v632, %v537
        %v665 = vmul.f32 %v633, %v541
        %v666 = vmul.f32 %v634, %v543
        %v667 = vmul.f32 %v635, %v545
        %v668 = vmul.f32 %v636, %v547
        %v669 = vmul.f32 %v637, %v551
        %v670 = vmul.f32 %v638, %v553
        %v671 = vmul.f32 %v639, %v555
        %v672 = vmul.f32 %v640, %v557
        %v673 = vmul.f32 %v641, %v561
        %v674 = vmul.f32 %v642, %v563
        %v675 = vmul.f32 %v643, %v565
        %v676 = vmul.f32 %v644, %v567
        %v677 = vmul.f32 %v645, %v571
        %v678 = vmul.f32 %v646, %v573
        %v679 = vmul.f32 %v647, %v575
        %v680 = vmul.f32 %v648, %v577
        %v681 = vmul.f32 %v649, %v581
        %v682 = vmul.f32 %v650, %v583
        %v683 = vmul.f32 %v651, %v585
        %v684 = vmul.f32 %v652, %v587
        %v685 = vmul.f32 %v653, %v511
        %v686 = vmul.f32 %v654, %v513
        %v687 = vmul.f32 %v655, %v515
        %v688 = vmul.f32 %v656, %v517
        %v689 = vmul.f32 %v657, %v521
        %v690 = vmul.f32 %v658, %v523
        %v691 = vmul.f32 %v659, %v525
        %v692 = vmul.f32 %v660, %v527
        %v693 = vmul.f32 %v661, %v531
        %v694 = vmul.f32 %v662, %v533
        %v695 = vmul.f32 %v663, %v535
        %v696 = vmul.f32 %v664, %v537
        %v697 = vmul.f32 %v665, %v541
        %v698 = vmul.f32 %v666, %v543
        %v699 = vmul.f32 %v667, %v545
        %v700 = vmul.f32 %v668, %v547
        %v701 = vmul.f32 %v669, %v551
        %v702 = vmul.f32 %v670, %v553
        %v703 = vmul.f32 %v671, %v555
        %v704 = vmul.f32 %v672, %v557
        %v705 = vmul.f32 %v673, %v561
        %v706 = vmul.f32 %v674, %v563
        %v707 = vmul.f32 %v675, %v565
        %v708 = vmul.f32 %v676, %v567
        %v709 = vmul.f32 %v677, %v571
        %v710 = vmul.f32 %v678, %v573
        %v711 = vmul.f32 %v679, %v575
        %v712 = vmul.f32 %v680, %v577
        %v713 = vmul.f32 %v681, %v581
        %v714 = vmul.f32 %v682, %v583
        %v715 = vmul.f32 %v683, %v585
        %v716 = vmul.f32 %v684, %v587
        %v717 = vadd.f32 %v511, %v685
        %v718 = vadd.f32 %v513, %v686
        %v719 = vadd.f32 %v515, %v687
        %v720 = vadd.f32 %v517, %v688
        %v721 = vadd.f32 %v521, %v689
        %v722 = vadd.f32 %v523, %v690
        %v723 = vadd.f32 %v525, %v691
        %v724 = vadd.f32 %v527, %v692
        %v725 = vadd.f32 %v531, %v693
        %v726 = vadd.f32 %v533, %v694
        %v727 = vadd.f32 %v535, %v695
        %v728 = vadd.f32 %v537, %v696
        %v729 = vadd.f32 %v541, %v697
        %v730 = vadd.f32 %v543, %v698
        %v731 = vadd.f32 %v545, %v699
        %v732 = vadd.f32 %v547, %v700
        %v733 = vadd.f32 %v551, %v701
        %v734 = vadd.f32 %v553, %v702
        %v735 = vadd.f32 %v555, %v703
        %v736 = vadd.f32 %v557, %v704
        %v737 = vadd.f32 %v561, %v705
        %v738 = vadd.f32 %v563, %v706
        %v739 = vadd.f32 %v565, %v707
        %v740 = vadd.f32 %v567, %v708
        %v741 = vadd.f32 %v571, %v709
        %v742 = vadd.f32 %v573, %v710
        %v743 = vadd.f32 %v575, %v711
        %v744 = vadd.f32 %v577, %v712
        %v745 = vadd.f32 %v581, %v713
        %v746 = vadd.f32 %v583, %v714
        %v747 = vadd.f32 %v585, %v715
        %v748 = vadd.f32 %v587, %v716
        %v749 = vmul.f32 %v717, 0.7978846
        %v750 = vmul.f32 %v718, 0.7978846
        %v751 = vmul.f32 %v719, 0.7978846
        %v752 = vmul.f32 %v720, 0.7978846
        %v753 = vmul.f32 %v721, 0.7978846
        %v754 = vmul.f32 %v722, 0.7978846
        %v755 = vmul.f32 %v723, 0.7978846
        %v756 = vmul.f32 %v724, 0.7978846
        %v757 = vmul.f32 %v725, 0.7978846
        %v758 = vmul.f32 %v726, 0.7978846
        %v759 = vmul.f32 %v727, 0.7978846
        %v760 = vmul.f32 %v728, 0.7978846
        %v761 = vmul.f32 %v729, 0.7978846
        %v762 = vmul.f32 %v730, 0.7978846
        %v763 = vmul.f32 %v731, 0.7978846
        %v764 = vmul.f32 %v732, 0.7978846
        %v765 = vmul.f32 %v733, 0.7978846
        %v766 = vmul.f32 %v734, 0.7978846
        %v767 = vmul.f32 %v735, 0.7978846
        %v768 = vmul.f32 %v736, 0.7978846
        %v769 = vmul.f32 %v737, 0.7978846
        %v770 = vmul.f32 %v738, 0.7978846
        %v771 = vmul.f32 %v739, 0.7978846
        %v772 = vmul.f32 %v740, 0.7978846
        %v773 = vmul.f32 %v741, 0.7978846
        %v774 = vmul.f32 %v742, 0.7978846
        %v775 = vmul.f32 %v743, 0.7978846
        %v776 = vmul.f32 %v744, 0.7978846
        %v777 = vmul.f32 %v745, 0.7978846
        %v778 = vmul.f32 %v746, 0.7978846
        %v779 = vmul.f32 %v747, 0.7978846
        %v780 = vmul.f32 %v748, 0.7978846
        %v781 = vtanh.pop %v749
        %v782 = vtanh.pop %v750
        %v783 = vtanh.pop %v751
        %v784 = vtanh.pop %v752
        %v785 = vtanh.pop %v753
        %v786 = vtanh.pop %v754
        %v787 = vtanh.pop %v755
        %v788 = vtanh.pop %v756
        %v789 = vtanh.pop %v757
        %v790 = vtanh.pop %v758
        %v791 = vtanh.pop %v759
        %v792 = vtanh.pop %v760
        %v793 = vtanh.pop %v761
        %v794 = vtanh.pop %v762
        %v795 = vtanh.pop %v763
        %v796 = vtanh.pop %v764
        %v797 = vtanh.pop %v765
        %v798 = vtanh.pop %v766
        %v799 = vtanh.pop %v767
        %v800 = vtanh.pop %v768
        %v801 = vtanh.pop %v769
        %v802 = vtanh.pop %v770
        %v803 = vtanh.pop %v771
        %v804 = vtanh.pop %v772
        %v805 = vtanh.pop %v773
        %v806 = vtanh.pop %v774
        %v807 = vtanh.pop %v775
        %v808 = vtanh.pop %v776
        %v809 = vtanh.pop %v777
        %v810 = vtanh.pop %v778
        %v811 = vtanh.pop %v779
        %v812 = vtanh.pop %v780
        %v813 = vadd.f32 %v781, 1.0
        %v814 = vadd.f32 %v782, 1.0
        %v815 = vadd.f32 %v783, 1.0
        %v816 = vadd.f32 %v784, 1.0
        %v817 = vadd.f32 %v785, 1.0
        %v818 = vadd.f32 %v786, 1.0
        %v819 = vadd.f32 %v787, 1.0
        %v820 = vadd.f32 %v788, 1.0
        %v821 = vadd.f32 %v789, 1.0
        %v822 = vadd.f32 %v790, 1.0
        %v823 = vadd.f32 %v791, 1.0
        %v824 = vadd.f32 %v792, 1.0
        %v825 = vadd.f32 %v793, 1.0
        %v826 = vadd.f32 %v794, 1.0
        %v827 = vadd.f32 %v795, 1.0
        %v828 = vadd.f32 %v796, 1.0
        %v829 = vadd.f32 %v797, 1.0
        %v830 = vadd.f32 %v798, 1.0
        %v831 = vadd.f32 %v799, 1.0
        %v832 = vadd.f32 %v800, 1.0
        %v833 = vadd.f32 %v801, 1.0
        %v834 = vadd.f32 %v802, 1.0
        %v835 = vadd.f32 %v803, 1.0
        %v836 = vadd.f32 %v804, 1.0
        %v837 = vadd.f32 %v805, 1.0
        %v838 = vadd.f32 %v806, 1.0
        %v839 = vadd.f32 %v807, 1.0
        %v840 = vadd.f32 %v808, 1.0
        %v841 = vadd.f32 %v809, 1.0
        %v842 = vadd.f32 %v810, 1.0
        %v843 = vadd.f32 %v811, 1.0
        %v844 = vadd.f32 %v812, 1.0
        %v845 = vmul.f32 %v589, %v813
        %v846 = vmul.f32 %v590, %v814
        %v847 = vmul.f32 %v591, %v815
        %v848 = vmul.f32 %v592, %v816
        %v849 = vmul.f32 %v593, %v817
        %v850 = vmul.f32 %v594, %v818
        %v851 = vmul.f32 %v595, %v819
        %v852 = vmul.f32 %v596, %v820
        %v853 = vmul.f32 %v597, %v821
        %v854 = vmul.f32 %v598, %v822
        %v855 = vmul.f32 %v599, %v823
        %v856 = vmul.f32 %v600, %v824
        %v857 = vmul.f32 %v601, %v825
        %v858 = vmul.f32 %v602, %v826
        %v859 = vmul.f32 %v603, %v827
        %v860 = vmul.f32 %v604, %v828
        %v861 = vmul.f32 %v605, %v829
        %v862 = vmul.f32 %v606, %v830
        %v863 = vmul.f32 %v607, %v831
        %v864 = vmul.f32 %v608, %v832
        %v865 = vmul.f32 %v609, %v833
        %v866 = vmul.f32 %v610, %v834
        %v867 = vmul.f32 %v611, %v835
        %v868 = vmul.f32 %v612, %v836
        %v869 = vmul.f32 %v613, %v837
        %v870 = vmul.f32 %v614, %v838
        %v871 = vmul.f32 %v615, %v839
        %v872 = vmul.f32 %v616, %v840
        %v873 = vmul.f32 %v617, %v841
        %v874 = vmul.f32 %v618, %v842
        %v875 = vmul.f32 %v619, %v843
        %v876 = vmul.f32 %v620, %v844
        %v877 = vld [vmem:[#allocation2] sm:$0xff]
        %v878 = vld [vmem:[#allocation2 + $0x8] sm:$0xff]
        %v879 = vld [vmem:[#allocation2 + $0x10] sm:$0xff]
        %v880 = vld [vmem:[#allocation2 + $0x18] sm:$0xff]
        %v881 = vld [vmem:[#allocation2 + $0x20] sm:$0xff]
        %v882 = vld [vmem:[#allocation2 + $0x28] sm:$0xff]
        %v883 = vld [vmem:[#allocation2 + $0x30] sm:$0xff]
        %v884 = vld [vmem:[#allocation2 + $0x38] sm:$0xff]
        %v885 = vld [vmem:[#allocation2 + $0x40] sm:$0xff]
        %v886 = vld [vmem:[#allocation2 + $0x48] sm:$0xff]
        %v887 = vld [vmem:[#allocation2 + $0x50] sm:$0xff]
        %v888 = vld [vmem:[#allocation2 + $0x58] sm:$0xff]
        %v889 = vld [vmem:[#allocation2 + $0x60] sm:$0xff]
        %v890 = vld [vmem:[#allocation2 + $0x68] sm:$0xff]
        %v891 = vld [vmem:[#allocation2 + $0x70] sm:$0xff]
        %v892 = vld [vmem:[#allocation2 + $0x78] sm:$0xff]
        %v893 = vpack.c.bf16 %v847, %v845
        %v894 = vpack.c.bf16 %v848, %v846
        %v895 = vpack.c.bf16 %v851, %v849
        %v896 = vpack.c.bf16 %v852, %v850
        %v897 = vpack.c.bf16 %v855, %v853
        %v898 = vpack.c.bf16 %v856, %v854
        %v899 = vpack.c.bf16 %v859, %v857
        %v900 = vpack.c.bf16 %v860, %v858
        %v901 = vpack.c.bf16 %v863, %v861
        %v902 = vpack.c.bf16 %v864, %v862
        %v903 = vpack.c.bf16 %v867, %v865
        %v904 = vpack.c.bf16 %v868, %v866
        %v905 = vpack.c.bf16 %v871, %v869
        %v906 = vpack.c.bf16 %v872, %v870
        %v907 = vpack.c.bf16 %v875, %v873
        %v908 = vpack.c.bf16 %v876, %v874
        %v909 = vld [vmem:[#allocation8] sm:$0xf]
        %v910 = vld [vmem:[#allocation8 + $0x4] sm:$0xf]
        %v911 = vld [vmem:[#allocation8 + $0x8] sm:$0xf]
        %v912 = vld [vmem:[#allocation8 + $0xc] sm:$0xf]
        %v913 = vld [vmem:[#allocation8 + $0x10] sm:$0xf]
        %v914 = vld [vmem:[#allocation8 + $0x14] sm:$0xf]
        %v915 = vld [vmem:[#allocation8 + $0x18] sm:$0xf]
        %v916 = vld [vmem:[#allocation8 + $0x1c] sm:$0xf]
        %v917 = vld [vmem:[#allocation8 + $0x20] sm:$0xf]
        %v918 = vld [vmem:[#allocation8 + $0x24] sm:$0xf]
        %v919 = vld [vmem:[#allocation8 + $0x28] sm:$0xf]
        %v920 = vld [vmem:[#allocation8 + $0x2c] sm:$0xf]
        %v921 = vld [vmem:[#allocation8 + $0x30] sm:$0xf]
        %v922 = vld [vmem:[#allocation8 + $0x34] sm:$0xf]
        %v923 = vld [vmem:[#allocation8 + $0x38] sm:$0xf]
        %v924 = vld [vmem:[#allocation8 + $0x3c] sm:$0xf]
        %v925 = vld [vmem:[#allocation8 + $0x40] sm:$0xf]
        %v926 = vld [vmem:[#allocation8 + $0x44] sm:$0xf]
        %v927 = vld [vmem:[#allocation8 + $0x48] sm:$0xf]
        %v928 = vld [vmem:[#allocation8 + $0x4c] sm:$0xf]
        %v929 = vld [vmem:[#allocation8 + $0x50] sm:$0xf]
        %v930 = vld [vmem:[#allocation8 + $0x54] sm:$0xf]
        %v931 = vld [vmem:[#allocation8 + $0x58] sm:$0xf]
        %v932 = vld [vmem:[#allocation8 + $0x5c] sm:$0xf]
        %v933 = vld [vmem:[#allocation8 + $0x60] sm:$0xf]
        %v934 = vld [vmem:[#allocation8 + $0x64] sm:$0xf]
        %v935 = vld [vmem:[#allocation8 + $0x68] sm:$0xf]
        %v936 = vld [vmem:[#allocation8 + $0x6c] sm:$0xf]
        %v937 = vld [vmem:[#allocation8 + $0x70] sm:$0xf]
        %v938 = vld [vmem:[#allocation8 + $0x74] sm:$0xf]
        %v939 = vld [vmem:[#allocation8 + $0x78] sm:$0xf]
        %v940 = vld [vmem:[#allocation8 + $0x7c] sm:$0xf]
        %v973 = vunpack.c.l.b16 %v909
        %v974 = vunpack.c.l.b16 %v910
        %v975 = vunpack.c.l.b16 %v911
        %v976 = vunpack.c.l.b16 %v912
        %v977 = vunpack.c.l.b16 %v913
        %v978 = vunpack.c.l.b16 %v914
        %v979 = vunpack.c.l.b16 %v915
        %v980 = vunpack.c.l.b16 %v916
        %v981 = vunpack.c.l.b16 %v917
        %v982 = vunpack.c.l.b16 %v918
        %v983 = vunpack.c.l.b16 %v919
        %v984 = vunpack.c.l.b16 %v920
        %v985 = vunpack.c.l.b16 %v921
        %v986 = vunpack.c.l.b16 %v922
        %v987 = vunpack.c.l.b16 %v923
        %v988 = vunpack.c.l.b16 %v924
        %v989 = vunpack.c.l.b16 %v925
        %v990 = vunpack.c.l.b16 %v926
        %v991 = vunpack.c.l.b16 %v927
        %v992 = vunpack.c.l.b16 %v928
        %v993 = vunpack.c.l.b16 %v929
        %v994 = vunpack.c.l.b16 %v930
        %v995 = vunpack.c.l.b16 %v931
        %v996 = vunpack.c.l.b16 %v932
        %v997 = vunpack.c.l.b16 %v933
        %v998 = vunpack.c.l.b16 %v934
        %v999 = vunpack.c.l.b16 %v935
        %v1000 = vunpack.c.l.b16 %v936
        %v1001 = vunpack.c.l.b16 %v937
        %v1002 = vunpack.c.l.b16 %v938
        %v1003 = vunpack.c.l.b16 %v939
        %v1004 = vunpack.c.l.b16 %v940
        %v1005 = vpack.c.b16 %v974, %v973
        %v1006 = vpack.c.b16 %v976, %v975
        %v1007 = vpack.c.b16 %v978, %v977
        %v1008 = vpack.c.b16 %v980, %v979
        %v1009 = vpack.c.b16 %v982, %v981
        %v1010 = vpack.c.b16 %v984, %v983
        %v1011 = vpack.c.b16 %v986, %v985
        %v1012 = vpack.c.b16 %v988, %v987
        %v1013 = vpack.c.b16 %v990, %v989
        %v1014 = vpack.c.b16 %v992, %v991
        %v1015 = vpack.c.b16 %v994, %v993
        %v1016 = vpack.c.b16 %v996, %v995
        %v1017 = vpack.c.b16 %v998, %v997
        %v1018 = vpack.c.b16 %v1000, %v999
        %v1019 = vpack.c.b16 %v1002, %v1001
        %v1020 = vpack.c.b16 %v1004, %v1003
        %1037 = vmatprep.subr.bf16.mxu0 0
        %1038 = vmatpush1.bf16.msra.mxu0 %v1012
        %1039 = vmatprep.subr.bf16.mxu0 0
        %1040 = vmatpush1.bf16.msra.mxu0 %v1011
        %1041 = vmatprep.subr.bf16.mxu0 0
        %1042 = vmatpush1.bf16.msra.mxu0 %v1010
        %1043 = vmatprep.subr.bf16.mxu0 0
        %1044 = vmatpush1.bf16.msra.mxu0 %v1009
        %1045 = vmatprep.subr.bf16.mxu0 0
        %1046 = vmatpush1.bf16.msra.mxu0 %v1008
        %1047 = vmatprep.subr.bf16.mxu0 0
        %1048 = vmatpush1.bf16.msra.mxu0 %v1007
        %1049 = vmatprep.subr.bf16.mxu0 0
        %1050 = vmatpush1.bf16.msra.mxu0 %v1006
        %1051 = vmatprep.subr.bf16.mxu0 0
        %1052 = vmatpush1.bf16.msra.mxu0 %v1005
        %1053 = vmatprep.subr.bf16.mxu0 0
        %1054 = vmatpush2.bf16.msra.mxu0 %v1020
        %1055 = vmatprep.subr.bf16.mxu0 0
        %1056 = vmatpush2.bf16.msra.mxu0 %v1019
        %1057 = vmatprep.subr.bf16.mxu0 0
        %1058 = vmatpush2.bf16.msra.mxu0 %v1018
        %1059 = vmatprep.subr.bf16.mxu0 0
        %1060 = vmatpush2.bf16.msra.mxu0 %v1017
        %1061 = vmatprep.subr.bf16.mxu0 0
        %1062 = vmatpush2.bf16.msra.mxu0 %v1016
        %1063 = vmatprep.subr.bf16.mxu0 0
        %1064 = vmatpush2.bf16.msra.mxu0 %v1015
        %1065 = vmatprep.subr.bf16.mxu0 0
        %1066 = vmatpush2.bf16.msra.mxu0 %v1014
        %1067 = vmatprep.subr.bf16.mxu0 0
        %1068 = vmatpush2.bf16.msra.mxu0 %v1013
        %1069 = vmatprep.mubr.bf16.mxu0 %v894
        %1070 = vmatmul.mubr.bf16.gmra.mxu0 %v893
        %v1071 = vpop.f32.mrf.mxu0
        %v1072 = vadd.f32 0.0, %v1071
        %v1073 = vpop.f32.mrf.mxu0
        %v1074 = vpop.f32.mrf.mxu0
        %v1075 = vadd.f32 0.0, %v1074
        %v1076 = vpop.f32.mrf.mxu0
        %1077 = vmatprep.mubr.bf16.mxu0 %v896
        %1078 = vmatmul.mubr.bf16.gmra.mxu0 %v895
        %v1079 = vpop.f32.mrf.mxu0
        %v1080 = vadd.f32 0.0, %v1079
        %v1081 = vpop.f32.mrf.mxu0
        %v1082 = vpop.f32.mrf.mxu0
        %v1083 = vadd.f32 0.0, %v1082
        %v1084 = vpop.f32.mrf.mxu0
        %1085 = vmatprep.mubr.bf16.mxu0 %v898
        %1086 = vmatmul.mubr.bf16.gmra.mxu0 %v897
        %v1087 = vpop.f32.mrf.mxu0
        %v1088 = vadd.f32 0.0, %v1087
        %v1089 = vpop.f32.mrf.mxu0
        %v1090 = vpop.f32.mrf.mxu0
        %v1091 = vadd.f32 0.0, %v1090
        %v1092 = vpop.f32.mrf.mxu0
        %1093 = vmatprep.mubr.bf16.mxu0 %v900
        %1094 = vmatmul.mubr.bf16.gmra.mxu0 %v899
        %v1095 = vpop.f32.mrf.mxu0
        %v1096 = vadd.f32 0.0, %v1095
        %v1097 = vpop.f32.mrf.mxu0
        %v1098 = vpop.f32.mrf.mxu0
        %v1099 = vadd.f32 0.0, %v1098
        %v1100 = vpop.f32.mrf.mxu0
        %1101 = vmatprep.mubr.bf16.mxu0 %v902
        %1102 = vmatmul.mubr.bf16.gmra.mxu0 %v901
        %v1103 = vpop.f32.mrf.mxu0
        %v1104 = vadd.f32 0.0, %v1103
        %v1105 = vpop.f32.mrf.mxu0
        %v1106 = vpop.f32.mrf.mxu0
        %v1107 = vadd.f32 0.0, %v1106
        %v1108 = vpop.f32.mrf.mxu0
        %1109 = vmatprep.mubr.bf16.mxu0 %v904
        %1110 = vmatmul.mubr.bf16.gmra.mxu0 %v903
        %v1111 = vpop.f32.mrf.mxu0
        %v1112 = vadd.f32 0.0, %v1111
        %v1113 = vpop.f32.mrf.mxu0
        %v1114 = vpop.f32.mrf.mxu0
        %v1115 = vadd.f32 0.0, %v1114
        %v1116 = vpop.f32.mrf.mxu0
        %1117 = vmatprep.mubr.bf16.mxu0 %v906
        %1118 = vmatmul.mubr.bf16.gmra.mxu0 %v905
        %v1119 = vpop.f32.mrf.mxu0
        %v1120 = vadd.f32 0.0, %v1119
        %v1121 = vpop.f32.mrf.mxu0
        %v1122 = vpop.f32.mrf.mxu0
        %v1123 = vadd.f32 0.0, %v1122
        %v1124 = vpop.f32.mrf.mxu0
        %1125 = vmatprep.mubr.bf16.mxu0 %v908
        %1126 = vmatmul.mubr.bf16.gmra.mxu0 %v907
        %v1127 = vpop.f32.mrf.mxu0
        %v1128 = vadd.f32 0.0, %v1127
        %v1129 = vpop.f32.mrf.mxu0
        %v1130 = vpop.f32.mrf.mxu0
        %v1131 = vadd.f32 0.0, %v1130
        %v1132 = vpop.f32.mrf.mxu0
        %1133 = vdwg.mxu0
        %v1134 = vadd.f32 %v877, %v1072
        %v1135 = vadd.f32 %v878, %v1075
        %v1136 = vadd.f32 %v879, %v1080
        %v1137 = vadd.f32 %v880, %v1083
        %v1138 = vadd.f32 %v881, %v1088
        %v1139 = vadd.f32 %v882, %v1091
        %v1140 = vadd.f32 %v883, %v1096
        %v1141 = vadd.f32 %v884, %v1099
        %v1142 = vadd.f32 %v885, %v1104
        %v1143 = vadd.f32 %v886, %v1107
        %v1144 = vadd.f32 %v887, %v1112
        %v1145 = vadd.f32 %v888, %v1115
        %v1146 = vadd.f32 %v889, %v1120
        %v1147 = vadd.f32 %v890, %v1123
        %v1148 = vadd.f32 %v891, %v1128
        %v1149 = vadd.f32 %v892, %v1131
        %1150 = vst [vmem:[#allocation2] sm:$0xff] %v1134
        %1151 = vst [vmem:[#allocation2 + $0x8] sm:$0xff] %v1135
        %1152 = vst [vmem:[#allocation2 + $0x10] sm:$0xff] %v1136
        %1153 = vst [vmem:[#allocation2 + $0x18] sm:$0xff] %v1137
        %1154 = vst [vmem:[#allocation2 + $0x20] sm:$0xff] %v1138
        %1155 = vst [vmem:[#allocation2 + $0x28] sm:$0xff] %v1139
        %1156 = vst [vmem:[#allocation2 + $0x30] sm:$0xff] %v1140
        %1157 = vst [vmem:[#allocation2 + $0x38] sm:$0xff] %v1141
        %1158 = vst [vmem:[#allocation2 + $0x40] sm:$0xff] %v1142
        %1159 = vst [vmem:[#allocation2 + $0x48] sm:$0xff] %v1143
        %1160 = vst [vmem:[#allocation2 + $0x50] sm:$0xff] %v1144
        %1161 = vst [vmem:[#allocation2 + $0x58] sm:$0xff] %v1145
        %1162 = vst [vmem:[#allocation2 + $0x60] sm:$0xff] %v1146
        %1163 = vst [vmem:[#allocation2 + $0x68] sm:$0xff] %v1147
        %1164 = vst [vmem:[#allocation2 + $0x70] sm:$0xff] %v1148
        %1165 = vst [vmem:[#allocation2 + $0x78] sm:$0xff] %v1149
        // Predicated region
        $region57: #{tpu_custom_call.1} parent=39 // pred_check
          %p1166 = pneg %p324
        $region58: #{tpu_custom_call.1} parent=39 // pred_check_branch
          %1168 = sbr.rel (%p1166) target = $region60
        $region59: #{tpu_custom_call.1} parent=39 // pred_region
          %v1169 = vld [vmem:[#allocation2] sm:$0xff]
          %v1170 = vld [vmem:[#allocation2 + $0x8] sm:$0xff]
          %v1171 = vld [vmem:[#allocation2 + $0x10] sm:$0xff]
          %v1172 = vld [vmem:[#allocation2 + $0x18] sm:$0xff]
          %v1173 = vld [vmem:[#allocation2 + $0x20] sm:$0xff]
          %v1174 = vld [vmem:[#allocation2 + $0x28] sm:$0xff]
          %v1175 = vld [vmem:[#allocation2 + $0x30] sm:$0xff]
          %v1176 = vld [vmem:[#allocation2 + $0x38] sm:$0xff]
          %v1177 = vld [vmem:[#allocation2 + $0x40] sm:$0xff]
          %v1178 = vld [vmem:[#allocation2 + $0x48] sm:$0xff]
          %v1179 = vld [vmem:[#allocation2 + $0x50] sm:$0xff]
          %v1180 = vld [vmem:[#allocation2 + $0x58] sm:$0xff]
          %v1181 = vld [vmem:[#allocation2 + $0x60] sm:$0xff]
          %v1182 = vld [vmem:[#allocation2 + $0x68] sm:$0xff]
          %v1183 = vld [vmem:[#allocation2 + $0x70] sm:$0xff]
          %v1184 = vld [vmem:[#allocation2 + $0x78] sm:$0xff]
          %v1185 = vld [vmem:[%s4] sm:$0x1]
          %v1187 = vlaneseq
          %v1188 = vshrl.u32 %v1187, 7
          %v1189 = vsub.s32 0, %v1188
          %v1190 = vrot.slane %v1185, %v1189
          %v1192 = vadd.f32 %v1169, %v1190
          %v1193 = vadd.f32 %v1170, %v1190
          %v1194 = vadd.f32 %v1171, %v1190
          %v1195 = vadd.f32 %v1172, %v1190
          %v1196 = vadd.f32 %v1173, %v1190
          %v1197 = vadd.f32 %v1174, %v1190
          %v1198 = vadd.f32 %v1175, %v1190
          %v1199 = vadd.f32 %v1176, %v1190
          %v1200 = vadd.f32 %v1177, %v1190
          %v1201 = vadd.f32 %v1178, %v1190
          %v1202 = vadd.f32 %v1179, %v1190
          %v1203 = vadd.f32 %v1180, %v1190
          %v1204 = vadd.f32 %v1181, %v1190
          %v1205 = vadd.f32 %v1182, %v1190
          %v1206 = vadd.f32 %v1183, %v1190
          %v1207 = vadd.f32 %v1184, %v1190
          %1208 = vst [vmem:[%s313] sm:$0xff] %v1192
          %1209 = vst [vmem:[%s313 + $0x8] sm:$0xff] %v1193
          %1210 = vst [vmem:[%s313 + $0x10] sm:$0xff] %v1194
          %1211 = vst [vmem:[%s313 + $0x18] sm:$0xff] %v1195
          %1212 = vst [vmem:[%s313 + $0x20] sm:$0xff] %v1196
          %1213 = vst [vmem:[%s313 + $0x28] sm:$0xff] %v1197
          %1214 = vst [vmem:[%s313 + $0x30] sm:$0xff] %v1198
          %1215 = vst [vmem:[%s313 + $0x38] sm:$0xff] %v1199
          %1216 = vst [vmem:[%s313 + $0x40] sm:$0xff] %v1200
          %1217 = vst [vmem:[%s313 + $0x48] sm:$0xff] %v1201
          %1218 = vst [vmem:[%s313 + $0x50] sm:$0xff] %v1202
          %1219 = vst [vmem:[%s313 + $0x58] sm:$0xff] %v1203
          %1220 = vst [vmem:[%s313 + $0x60] sm:$0xff] %v1204
          %1221 = vst [vmem:[%s313 + $0x68] sm:$0xff] %v1205
          %1222 = vst [vmem:[%s313 + $0x70] sm:$0xff] %v1206
          %1223 = vst [vmem:[%s313 + $0x78] sm:$0xff] %v1207
        $region60: #{tpu_custom_call.1} parent=39 // pred_fallthru
          _
        %s1224 = sand.u32 %s168, 1
        %s1225 = scalar_lea.sflag [#allocation5], %s1224
        %s1226 = sand.u32 %s168, 1
        %s1227 = smul.addr %s1226, 128
        %s1228 = scalar_lea.vmem [#allocation9], %s1227
        // Predicated region
        $region61: #{tpu_custom_call.1} parent=39 // pred_check
          %p1229 = pneg %p178
        $region62: #{tpu_custom_call.1} parent=39 // pred_check_branch
          %1231 = sbr.rel (%p1229) target = $region64
        $region63: #{tpu_custom_call.1} parent=39 // pred_region
          %s1232 = smul.u32 16, %s27
          %s1234 = ssub.s32 2048, 2048
          %1235 = vsyncadd %s1225, %s1234
          %s1236 = smul.addr %s1232, 128
          %s1237 = scalar_lea.hbm %s5, %s1236
          %s1238 = sshll.u32 %s1228, 4
          %s1239 = int_to_ptr.vmem [resolvable:$true] %s1238
          %1244 = dma.vmem_to_hbm [thread:$0]  %s1239, 2048, %s1237, %s1225, 128, 128, 8
        $region64: #{tpu_custom_call.1} parent=39 // pred_fallthru
          _
      $region40: #{tpu_custom_call.1} parent=5 // pred_fallthru
        _
      %p1245 = scmp.le.s32.totalorder 2, %s18
      // Predicated region
      $region65: #{tpu_custom_call.1} parent=5 // pred_check
        %p1246 = pneg %p1245
      $region66: #{tpu_custom_call.1} parent=5 // pred_check_branch
        %1248 = sbr.rel (%p1246) target = $region68
      $region67: #{tpu_custom_call.1} parent=5 // pred_region
        %s1249 = ssub.s32 %s18, 2
        // Predicated region
        $region69: #{tpu_custom_call.1} parent=67 // pred_check
          %p1250 = pneg %p184
        $region70: #{tpu_custom_call.1} parent=67 // pred_check_branch
          %1252 = sbr.rel (%p1250) target = $region72
        $region71: #{tpu_custom_call.1} parent=67 // pred_region
          %s1253 = sand.u32 %s169, 1
          %s1254 = scalar_lea.sflag [#allocation5], %s1253
          %s1255 = sand.u32 %s169, 1
          %s1256 = smul.addr %s1255, 128
          %s1257 = scalar_lea.vmem [#allocation9], %s1256
          %1258 = dma.done %s1254, 2048
        $region72: #{tpu_custom_call.1} parent=67 // pred_fallthru
          _
      $region68: #{tpu_custom_call.1} parent=5 // pred_fallthru
        _
    $region6: #{tpu_custom_call.1} parent=1 // loop_footer
      %s22 = sadd.s32 1, %s18
    $region7: #{tpu_custom_call.1} parent=1 // loop_footer_branch
      %17 = sbr.rel target = $region3
    $region8: #{tpu_custom_call.1} parent=1 // loop_exit
      _
    %1259 = vsyncpa [#allocation4], 1
    %s1260 = scalar_lea.sflag [#allocation4], 1
    %1261 = vsyncpa %s1260, 1
    %1262 = vsyncpa [#allocation7], 1
    %1263 = vsyncpa [#allocation5], 1
    %s1264 = scalar_lea.sflag [#allocation5], 1
    %1265 = vsyncpa %s1264, 1

</llo_original>
